<compile_context>
chip_gen: v7x
topology: tpu7x:2x2x1
jax: 0.10.0
libtpu: 0.0.40
codegen_flags: <defaults>
</compile_context>

<pallas_src>
import functools

import jax
import jax.numpy as jnp
from jax.experimental import pallas as pl
from jax.experimental.pallas import tpu as pltpu


def _round_up(x, m):
    return ((x + m - 1) // m) * m


def _vmem_capacity_bytes():
    """Physical VMEM per TensorCore (128 MiB v5e/v6e, 64 MiB v7x), best effort."""
    try:
        info = pltpu.get_tpu_info()
        for attr in ("vmem_capacity_bytes", "vmem_bytes"):
            cap = getattr(info, attr, None)
            if cap:
                return int(cap)
    except Exception:
        pass
    return 64 * 1024 * 1024          # conservative: v7x per-TensorCore VMEM


# ---------------------------------------------------------------------------
# Kernels
# ---------------------------------------------------------------------------
def _resident_kernel(x_ref, w_ref, b_ref, o_ref, *, normalize):
    """W^T slab fully VMEM-resident: single fused dot + bias + l2norm."""
    feats = jnp.dot(x_ref[...].astype(jnp.bfloat16), w_ref[...],
                    preferred_element_type=jnp.float32) + b_ref[...]
    if normalize:
        sq = jnp.sum(feats * feats, axis=-1, keepdims=True)
        feats = feats * jax.lax.rsqrt(sq)
    o_ref[...] = feats.astype(o_ref.dtype)


def _ktiled_kernel_inplace(x_ref, w_ref, b_ref, o_ref, *, normalize):
    """K-tiled fallback, f32 output: accumulate straight into the resident
    output block (its block index (i, 0) is constant across k); bias is folded
    into the k == 0 init and the l2norm epilogue runs at the last k step."""
    k = pl.program_id(1)

    @pl.when(k == 0)
    def _():
        o_ref[...] = jnp.broadcast_to(b_ref[...], o_ref.shape)

    o_ref[...] += jnp.dot(x_ref[...].astype(jnp.bfloat16), w_ref[...],
                          preferred_element_type=jnp.float32)

    if normalize:
        @pl.when(k == pl.num_programs(1) - 1)
        def _():
            feats = o_ref[...]
            sq = jnp.sum(feats * feats, axis=-1, keepdims=True)
            o_ref[...] = feats * jax.lax.rsqrt(sq)


def _ktiled_kernel_scratch(x_ref, w_ref, b_ref, o_ref, acc_ref, *, normalize):
    """K-tiled fallback for non-f32 output dtypes: f32 VMEM accumulator."""
    k = pl.program_id(1)

    @pl.when(k == 0)
    def _():
        acc_ref[...] = jnp.broadcast_to(b_ref[...], acc_ref.shape)

    acc_ref[...] += jnp.dot(x_ref[...].astype(jnp.bfloat16), w_ref[...],
                            preferred_element_type=jnp.float32)

    @pl.when(k == pl.num_programs(1) - 1)
    def _():
        feats = acc_ref[...]
        if normalize:
            sq = jnp.sum(feats * feats, axis=-1, keepdims=True)
            feats = feats * jax.lax.rsqrt(sq)
        o_ref[...] = feats.astype(o_ref.dtype)


# ---------------------------------------------------------------------------
# Host-side wrappers
# ---------------------------------------------------------------------------
def prepare_fc_params(weight, bias):
    """Pre-lay-out fc params once (hoisted out of the per-call path).

    weight: (embed_size, img_dim); bias: (embed_size,).
    Returns the padded, transposed bf16 weight slab (K_pad, N_pad) and the
    padded f32 bias row (1, N_pad). Zero padding keeps the dot product and the
    L2 norm over the padded embed axis exact.
    """
    embed, img_dim = weight.shape
    k_pad = _round_up(img_dim, 128)
    n_pad = _round_up(embed, 128)
    w_p = jnp.pad(weight.astype(jnp.float32).T,
                  ((0, k_pad - img_dim), (0, n_pad - embed))).astype(jnp.bfloat16)
    b_p = jnp.pad(bias.astype(jnp.float32), (0, n_pad - embed)).reshape(1, n_pad)
    return {"w_p": w_p, "b_p": b_p, "img_dim": img_dim, "embed": embed}


def encoder_image_precomp(images, weight=None, bias=None, *, params=None,
                          no_imgnorm=False, tile_m=512, tile_k=512,
                          out_dtype=jnp.float32, _force_k_tiling=False):
    """images: (..., img_dim). Pass either (weight, bias) or a pre-built
    params=prepare_fc_params(weight, bias) to keep param prep off the hot path."""
    if params is None:
        params = prepare_fc_params(weight, bias)
    w_p, b_p = params["w_p"], params["b_p"]
    img_dim, embed = params["img_dim"], params["embed"]
    k_pad, n_pad = w_p.shape

    images = images.astype(jnp.float32)            # mirrors images.float()
    lead_shape = images.shape[:-1]
    x2d = images.reshape(-1, img_dim)
    m = x2d.shape[0]

    out_dt = jnp.result_type(out_dtype)
    out_bytes = out_dt.itemsize
    vmem_cap = _vmem_capacity_bytes()
    vmem_limit = max(32 * 1024 * 1024,
                     min(vmem_cap * 3 // 4, vmem_cap - 8 * 1024 * 1024))

    # ---- tile selection ----------------------------------------------------
    tile_m = min(tile_m, _round_up(m, 16))         # bf16-friendly sublanes
    tile_m = max(16, _round_up(tile_m, 16))

    # W-resident path: whole (K_pad, N_pad) bf16 slab (double-buffered) fits
    # comfortably in VMEM -> no K grid axis, W streamed from HBM only once.
    w_buf_bytes = 2 * k_pad * n_pad * 2
    use_resident = (not _force_k_tiling) and (w_buf_bytes <= vmem_limit // 2)
    acc_in_out = out_dt == jnp.float32

    if use_resident:
        def _res_fp(tm):
            return (w_buf_bytes + 2 * tm * k_pad * 4
                    + 2 * tm * n_pad * out_bytes + 2 * n_pad * 4)
        while _res_fp(tile_m) > vmem_limit * 9 // 10 and tile_m > 16:
            tile_m = max(16, _round_up(tile_m // 2, 16))
        use_resident = _res_fp(tile_m) <= vmem_limit * 9 // 10

    if not use_resident:
        # tile_k: largest 128-multiple divisor of K_pad within the request, so
        # no MXU cycles are spent multiplying padded zero K columns.
        n_kblk = k_pad // 128
        blk = 1
        for d in range(1, n_kblk + 1):
            if n_kblk % d == 0 and d * 128 <= max(tile_k, 128):
                blk = d
        tile_k = blk * 128

        def _fb_fp(tm):
            return (2 * tm * tile_k * 4 + 2 * tile_k * n_pad * 2
                    + 2 * tm * n_pad * out_bytes
                    + (0 if acc_in_out else tm * n_pad * 4) + 2 * n_pad * 4)
        while _fb_fp(tile_m) > vmem_limit * 9 // 10 and tile_m > 16:
            tile_m = max(16, _round_up(tile_m // 2, 16))

    # Keep >= 2 tiles on the "parallel" M axis for large M so v7x's two
    # TensorCores both get work (no effect on single-core v5e/v6e).
    if _round_up(m, tile_m) // tile_m == 1 and m >= 256:
        tile_m = _round_up((m + 1) // 2, 16)

    m_pad = _round_up(m, tile_m)

    # x stays f32 (cast to bf16 in-kernel right before the MXU dot); only pad
    # when the geometry requires it so the common aligned case pays no extra
    # wrapper HBM pass.
    if m_pad != m or k_pad != img_dim:
        x2d = jnp.pad(x2d, ((0, m_pad - m), (0, k_pad - img_dim)))

    normalize = not no_imgnorm

    if use_resident:
        kernel = functools.partial(_resident_kernel, normalize=normalize)
        grid_spec = pltpu.PrefetchScalarGridSpec(
            num_scalar_prefetch=0,
            grid=(m_pad // tile_m,),
            in_specs=[
                pl.BlockSpec((tile_m, k_pad), lambda i: (i, 0)),
                pl.BlockSpec((k_pad, n_pad), lambda i: (0, 0)),   # resident W
                pl.BlockSpec((1, n_pad), lambda i: (0, 0)),
            ],
            out_specs=pl.BlockSpec((tile_m, n_pad), lambda i: (i, 0)),
            scratch_shapes=[],
        )
        dim_sem = ("parallel",)
    else:
        if acc_in_out:
            kernel = functools.partial(_ktiled_kernel_inplace,
                                       normalize=normalize)
            scratch = []
        else:
            kernel = functools.partial(_ktiled_kernel_scratch,
                                       normalize=normalize)
            scratch = [pltpu.VMEM((tile_m, n_pad), jnp.float32)]
        grid_spec = pltpu.PrefetchScalarGridSpec(
            num_scalar_prefetch=0,
            grid=(m_pad // tile_m, k_pad // tile_k),
            in_specs=[
                pl.BlockSpec((tile_m, tile_k), lambda i, k: (i, k)),
                pl.BlockSpec((tile_k, n_pad), lambda i, k: (k, 0)),
                pl.BlockSpec((1, n_pad), lambda i, k: (0, 0)),
            ],
            out_specs=pl.BlockSpec((tile_m, n_pad), lambda i, k: (i, 0)),
            scratch_shapes=scratch,
        )
        dim_sem = ("parallel", "arbitrary")

    out_p = pl.pallas_call(
        kernel,
        out_shape=jax.ShapeDtypeStruct((m_pad, n_pad), out_dt),
        grid_spec=grid_spec,
        compiler_params=pltpu.CompilerParams(
            dimension_semantics=dim_sem,
            vmem_limit_bytes=vmem_limit,
        ),
    )(x2d, w_p, b_p)

    # Zero-padded rows normalize to NaN (eps-free rsqrt, exactly matching the
    # reference l2norm for real rows); they are sliced off here.
    out2d = out_p[:m, :embed]
    return out2d.reshape(*lead_shape, embed)


def init_params(key, img_dim, embed_size):
    """Xavier-uniform fc weight, zero bias — as in init_weights()."""
    r = jnp.sqrt(6.0) / jnp.sqrt(float(img_dim + embed_size))
    w = jax.random.uniform(key, (embed_size, img_dim),
                           minval=-r, maxval=r, dtype=jnp.float32)
    b = jnp.zeros((embed_size,), dtype=jnp.float32)
    return w, b


if __name__ == "__main__":
    key = jax.random.PRNGKey(0)
    k_img, k_w, k_img2, k_w2 = jax.random.split(key, 4)

    # Reference with the same bf16 operand quantization, f32 accumulation.
    def ref_fn(x, w, b, normalize=True):
        xb = x.astype(jnp.bfloat16).astype(jnp.float32)
        wb = w.astype(jnp.bfloat16).astype(jnp.float32)
        lin = jnp.einsum("...d,ed->...e", xb, wb,
                         precision=jax.lax.Precision.HIGHEST) + b
        if not normalize:
            return lin
        return lin / jnp.sqrt(jnp.sum(lin * lin, axis=-1, keepdims=True))

    # --- small config: exercises the W-resident (single M-axis) path --------
    batch, n_regions, img_dim, embed_size = 2, 8, 64, 32
    images = jax.random.normal(k_img, (batch, n_regions, img_dim),
                               dtype=jnp.float32)
    weight, bias = init_params(k_w, img_dim, embed_size)
    params = prepare_fc_params(weight, bias)       # hoisted param prep

    out = jax.block_until_ready(encoder_image_precomp(images, params=params))
    assert out.shape == (batch, n_regions, embed_size)
    ref = ref_fn(images, weight, bias)
    assert jnp.allclose(out, ref, atol=2e-3, rtol=2e-3), \
        float(jnp.max(jnp.abs(out - ref)))

    # no_imgnorm path (skips the normalize epilogue).
    out_nn = jax.block_until_ready(
        encoder_image_precomp(images, params=params, no_imgnorm=True))
    assert jnp.allclose(out_nn, ref_fn(images, weight, bias, normalize=False),
                        atol=2e-3, rtol=2e-3)

    # --- exercise the K-tiled fallback (accumulate into resident output) ----
    img_dim2, embed2 = 256, 64
    images2 = jax.random.normal(k_img2, (batch, n_regions, img_dim2),
                                dtype=jnp.float32)
    weight2, bias2 = init_params(k_w2, img_dim2, embed2)
    out2 = jax.block_until_ready(
        encoder_image_precomp(images2, weight2, bias2,
                              tile_k=128, _force_k_tiling=True))
    ref2 = ref_fn(images2, weight2, bias2)
    assert jnp.allclose(out2, ref2, atol=2e-3, rtol=2e-3), \
        float(jnp.max(jnp.abs(out2 - ref2)))

    print("KERNEL_OK")
</pallas_src>

<mosaic_0001>
module attributes {stable_mosaic.version = 11 : i64} {
  func.func @_resident_kernel(%arg0: i32, %arg1: memref<16x128xf32, #tpu.memory_space<vmem>>, %arg2: memref<128x128xbf16, #tpu.memory_space<vmem>>, %arg3: memref<1x128xf32, #tpu.memory_space<vmem>>, %arg4: memref<16x128xf32, #tpu.memory_space<vmem>>) attributes {dimension_semantics = [#tpu.dimension_semantics<parallel>], iteration_bounds = array<i64: 1>, scalar_prefetch = 0 : i64, scratch_operands = 0 : i64, tpu.core_type = #tpu.core_type<tc>, window_params = [{transform_indices = @transform_0, window_bounds = array<i64: 16, 128>}, {pipeline_mode = #tpu.pipeline_mode<synchronous>, transform_indices = @transform_1, window_bounds = array<i64: 128, 128>}, {pipeline_mode = #tpu.pipeline_mode<synchronous>, transform_indices = @transform_2, window_bounds = array<i64: 1, 128>}, {transform_indices = @transform_3, window_bounds = array<i64: 16, 128>}]} {
    %c0 = arith.constant 0 : index
    %c0_0 = arith.constant 0 : index
    %0 = vector.load %arg1[%c0, %c0_0] : memref<16x128xf32, #tpu.memory_space<vmem>>, vector<16x128xf32>
    %1 = arith.truncf %0 : vector<16x128xf32> to vector<16x128xbf16>
    %c0_1 = arith.constant 0 : index
    %c0_2 = arith.constant 0 : index
    %2 = vector.load %arg2[%c0_1, %c0_2] : memref<128x128xbf16, #tpu.memory_space<vmem>>, vector<128x128xbf16>
    %cst = arith.constant dense<0.000000e+00> : vector<16x128xf32>
    %3 = tpu.matmul %1, %2, %cst {dimension_numbers = #tpu.dot_dimension_numbers<[1], [0], [0], [1], [0, 0, 1, 1], [], []>} : vector<16x128xbf16>, vector<128x128xbf16>, vector<16x128xf32> -> vector<16x128xf32>
    %c0_3 = arith.constant 0 : index
    %c0_4 = arith.constant 0 : index
    %4 = vector.load %arg3[%c0_3, %c0_4] : memref<1x128xf32, #tpu.memory_space<vmem>>, vector<1x128xf32>
    %5 = vector.broadcast %4 : vector<1x128xf32> to vector<16x128xf32>
    %6 = arith.addf %3, %5 : vector<16x128xf32>
    %7 = arith.mulf %6, %6 : vector<16x128xf32>
    %cst_5 = arith.constant dense<0.000000e+00> : vector<16xf32>
    %8 = vector.multi_reduction <add>, %7, %cst_5 [1] : vector<16x128xf32> to vector<16xf32>
    %9 = vector.shape_cast %8 : vector<16xf32> to vector<16x1xf32>
    %10 = math.rsqrt %9 : vector<16x1xf32>
    %11 = vector.broadcast %10 : vector<16x1xf32> to vector<16x128xf32>
    %12 = arith.mulf %6, %11 : vector<16x128xf32>
    %c0_6 = arith.constant 0 : index
    %c0_7 = arith.constant 0 : index
    %13 = vector.load %arg4[%c0_6, %c0_7] : memref<16x128xf32, #tpu.memory_space<vmem>>, vector<16x128xf32>
    tpu.vector_store %arg4[%c0_6, %c0_7], %12 {strides = array<i32>} : memref<16x128xf32, #tpu.memory_space<vmem>>, vector<16x128xf32>,
    return
  }
  func.func @transform_0(%arg0: i32) -> (i32, i32) {
    %c0_i32 = arith.constant 0 : i32
    %c0_i32_0 = arith.constant 0 : i32
    return %arg0, %c0_i32 : i32, i32
  }
  func.func @transform_1(%arg0: i32) -> (i32, i32) {
    %c0_i32 = arith.constant 0 : i32
    %c0_i32_0 = arith.constant 0 : i32
    %c0_i32_1 = arith.constant 0 : i32
    return %c0_i32, %c0_i32_0 : i32, i32
  }
  func.func @transform_2(%arg0: i32) -> (i32, i32) {
    %c0_i32 = arith.constant 0 : i32
    %c0_i32_0 = arith.constant 0 : i32
    %c0_i32_1 = arith.constant 0 : i32
    return %c0_i32, %c0_i32_0 : i32, i32
  }
  func.func @transform_3(%arg0: i32) -> (i32, i32) {
    %c0_i32 = arith.constant 0 : i32
    %c0_i32_0 = arith.constant 0 : i32
    return %arg0, %c0_i32 : i32, i32
  }
}

</mosaic_0001>

<llo_original>
// kernel: tpu_custom_call.1
$region0: #{tpu_custom_call.1}
  #allocation0 [shape = 'u32[]', space=smem, size = 0x4, offset = 0x4, fixed_abs, tag = 'smem constant byte address 0x4 - core index']
  #allocation1 [shape = 'u32[144,128]{1,0:T(1,128)}', space=vmem, size = 0x12000, scoped, tag = 'internal scratch']
  %s0 = inlined_call_operand.hbm [shape: f32[16,128], index: 0, kind: input, shape index: {}]
  %s1 = inlined_call_operand.hbm [shape: bf16[128,128], index: 1, kind: input, shape index: {}]
  %s2 = inlined_call_operand.vmem [shape: f32[1,128], index: 2, kind: input, shape index: {}]
  %s3 = inlined_call_operand.hbm [shape: f32[16,128], index: 3, kind: output, shape index: {}]
  %s4 = sld [smem:[#allocation0]]
  $region30: #{tpu_custom_call.1} parent=0
    _
  %s6 = ssub.s32 1, %s4
  %s7 = scalar_select 0, %s6, %s4
  $region1: #{tpu_custom_call.1} parent=0
    #allocation2 [shape = 'u8[8192]{0}', space=vmem, size = 0x2000, scoped, tag = 'input window, operand 0, single buffered']
    #allocation3 [shape = 's32[1]{0}', space=sflag, size = 0x4, scoped, tag = 'scoped memory for tpu_custom_call.1']
    #allocation4 [shape = 's32[1]{0}', space=sflag, size = 0x4, scoped, tag = 'scoped memory for tpu_custom_call.1']
    #allocation5 [shape = 'u8[32768]{0}', space=vmem, size = 0x8000, scoped, tag = 'input window, operand 1, single buffered']
    #allocation6 [shape = 's32[1]{0}', space=sflag, size = 0x4, scoped, tag = 'scoped memory for tpu_custom_call.1']
    #allocation7 [shape = 'u8[8192]{0}', space=vmem, size = 0x2000, scoped, tag = 'output window, operand 0, single buffered']
    %8 = vsyncpa [#allocation3], 0
    %9 = vsyncpa [#allocation6], 0
    %10 = vsyncpa [#allocation4], 0
    // Predicated region
    $region2: #{tpu_custom_call.1} parent=1 // pred_check
      _
    $region3: #{tpu_custom_call.1} parent=1 // pred_check_branch
      %12 = sbr.rel (0) target = $region5
    $region4: #{tpu_custom_call.1} parent=1 // pred_region
      %s14 = ssub.s32 256, 256
      %15 = vsyncadd [#allocation3], %s14
      %s16 = sshll.u32 [#allocation2], 4
      %s17 = int_to_ptr.vmem [resolvable:$true] %s16
      %22 = dma.hbm_to_vmem [thread:$0]  %s0, 256, %s17, [#allocation3], 128, 128, 8
    $region5: #{tpu_custom_call.1} parent=1 // pred_fallthru
      _
    // Predicated region
    $region6: #{tpu_custom_call.1} parent=1 // pred_check
      _
    $region7: #{tpu_custom_call.1} parent=1 // pred_check_branch
      %24 = sbr.rel (0) target = $region9
    $region8: #{tpu_custom_call.1} parent=1 // pred_region
      %s26 = ssub.s32 1024, 1024
      %27 = vsyncadd [#allocation6], %s26
      %s28 = sshll.u32 [#allocation5], 4
      %s29 = int_to_ptr.vmem [resolvable:$true] %s28
      %34 = dma.hbm_to_vmem [thread:$0]  %s1, 1024, %s29, [#allocation6], 64, 64, 4
    $region9: #{tpu_custom_call.1} parent=1 // pred_fallthru
      _
    // Predicated region
    $region10: #{tpu_custom_call.1} parent=1 // pred_check
      _
    $region11: #{tpu_custom_call.1} parent=1 // pred_check_branch
      %36 = sbr.rel (0) target = $region13
    $region12: #{tpu_custom_call.1} parent=1 // pred_region
      _
    $region13: #{tpu_custom_call.1} parent=1 // pred_fallthru
      _
    // Predicated region
    $region14: #{tpu_custom_call.1} parent=1 // pred_check
      _
    $region15: #{tpu_custom_call.1} parent=1 // pred_check_branch
      %38 = sbr.rel (0) target = $region17
    $region16: #{tpu_custom_call.1} parent=1 // pred_region
      %39 = dma.done [#allocation3], 256
    $region17: #{tpu_custom_call.1} parent=1 // pred_fallthru
      _
    // Predicated region
    $region18: #{tpu_custom_call.1} parent=1 // pred_check
      _
    $region19: #{tpu_custom_call.1} parent=1 // pred_check_branch
      %41 = sbr.rel (0) target = $region21
    $region20: #{tpu_custom_call.1} parent=1 // pred_region
      %42 = dma.done [#allocation6], 1024
    $region21: #{tpu_custom_call.1} parent=1 // pred_fallthru
      _
    %v44 = vld [vmem:[#allocation2] sm:$0xff]
    %v45 = vld [vmem:[#allocation2 + $0x8] sm:$0xff]
    %v46 = vpack.c.bf16 %v45, %v44
    %v47 = vld [vmem:[#allocation5] sm:$0xf]
    %v48 = vld [vmem:[#allocation5 + $0x4] sm:$0xf]
    %v49 = vld [vmem:[#allocation5 + $0x8] sm:$0xf]
    %v50 = vld [vmem:[#allocation5 + $0xc] sm:$0xf]
    %v51 = vld [vmem:[#allocation5 + $0x10] sm:$0xf]
    %v52 = vld [vmem:[#allocation5 + $0x14] sm:$0xf]
    %v53 = vld [vmem:[#allocation5 + $0x18] sm:$0xf]
    %v54 = vld [vmem:[#allocation5 + $0x1c] sm:$0xf]
    %v55 = vld [vmem:[#allocation5 + $0x20] sm:$0xf]
    %v56 = vld [vmem:[#allocation5 + $0x24] sm:$0xf]
    %v57 = vld [vmem:[#allocation5 + $0x28] sm:$0xf]
    %v58 = vld [vmem:[#allocation5 + $0x2c] sm:$0xf]
    %v59 = vld [vmem:[#allocation5 + $0x30] sm:$0xf]
    %v60 = vld [vmem:[#allocation5 + $0x34] sm:$0xf]
    %v61 = vld [vmem:[#allocation5 + $0x38] sm:$0xf]
    %v62 = vld [vmem:[#allocation5 + $0x3c] sm:$0xf]
    %v63 = vld [vmem:[%s2] sm:$0x1]
    %v65 = vlaneseq
    %v66 = vshrl.u32 %v65, 7
    %v67 = vsub.s32 0, %v66
    %v68 = vrot.slane %v63, %v67
    %v86 = vunpack.c.l.b16 %v47
    %v87 = vunpack.c.l.b16 %v48
    %v88 = vunpack.c.l.b16 %v49
    %v89 = vunpack.c.l.b16 %v50
    %v90 = vunpack.c.l.b16 %v51
    %v91 = vunpack.c.l.b16 %v52
    %v92 = vunpack.c.l.b16 %v53
    %v93 = vunpack.c.l.b16 %v54
    %v94 = vunpack.c.l.b16 %v55
    %v95 = vunpack.c.l.b16 %v56
    %v96 = vunpack.c.l.b16 %v57
    %v97 = vunpack.c.l.b16 %v58
    %v98 = vunpack.c.l.b16 %v59
    %v99 = vunpack.c.l.b16 %v60
    %v100 = vunpack.c.l.b16 %v61
    %v101 = vunpack.c.l.b16 %v62
    %v102 = vpack.c.b16 %v87, %v86
    %v103 = vpack.c.b16 %v89, %v88
    %v104 = vpack.c.b16 %v91, %v90
    %v105 = vpack.c.b16 %v93, %v92
    %v106 = vpack.c.b16 %v95, %v94
    %v107 = vpack.c.b16 %v97, %v96
    %v108 = vpack.c.b16 %v99, %v98
    %v109 = vpack.c.b16 %v101, %v100
    %118 = vmatprep.subr.bf16.mxu0 0
    %119 = vmatpush1.bf16.msra.mxu0 %v102
    %120 = vmatprep.subr.bf16.mxu0 0
    %121 = vmatpush1.bf16.msra.mxu0 %v103
    %122 = vmatprep.subr.bf16.mxu0 0
    %123 = vmatpush1.bf16.msra.mxu0 %v104
    %124 = vmatprep.subr.bf16.mxu0 0
    %125 = vmatpush1.bf16.msra.mxu0 %v105
    %126 = vmatprep.subr.bf16.mxu0 0
    %127 = vmatpush1.bf16.msra.mxu0 %v106
    %128 = vmatprep.subr.bf16.mxu0 0
    %129 = vmatpush1.bf16.msra.mxu0 %v107
    %130 = vmatprep.subr.bf16.mxu0 0
    %131 = vmatpush1.bf16.msra.mxu0 %v108
    %132 = vmatprep.subr.bf16.mxu0 0
    %133 = vmatpush1.bf16.msra.mxu0 %v109
    %134 = vmatprep.subr.bf16.mxu0 0
    %135 = vmatpush1.bf16.msra.mxu0 0
    %136 = vmatprep.subr.bf16.mxu0 0
    %137 = vmatpush1.bf16.msra.mxu0 0
    %138 = vmatprep.subr.bf16.mxu0 0
    %139 = vmatpush1.bf16.msra.mxu0 0
    %140 = vmatprep.subr.bf16.mxu0 0
    %141 = vmatpush1.bf16.msra.mxu0 0
    %142 = vmatprep.subr.bf16.mxu0 0
    %143 = vmatpush1.bf16.msra.mxu0 0
    %144 = vmatprep.subr.bf16.mxu0 0
    %145 = vmatpush1.bf16.msra.mxu0 0
    %146 = vmatprep.subr.bf16.mxu0 0
    %147 = vmatpush1.bf16.msra.mxu0 0
    %148 = vmatprep.subr.bf16.mxu0 0
    %149 = vmatpush1.bf16.msra.mxu0 0
    %150 = vmatprep.mubr.bf16.mxu0 0
    %151 = vmatmul.mubr.bf16.gmra.mrb[0].mxu0 %v46
    %v152 = vpop.f32.mrb[0].mxu0
    %v153 = vadd.f32 %v68, %v152
    %v154 = vpop.f32.mrb[0].mxu0
    %v155 = vpop.f32.mrb[0].mxu0
    %v156 = vadd.f32 %v68, %v155
    %v157 = vpop.f32.mrb[0].mxu0
    %158 = vdwg.mxu0
    %v159 = vmul.f32 %v153, %v153
    %v160 = vmul.f32 %v156, %v156
    %161 = vadd.xlane.f32.xlu0 %v159
    %v162 = vpop.xlane.xlu0 %161
    %163 = vadd.xlane.f32.xlu0 %v160
    %v164 = vpop.xlane.xlu0 %163
    %v165 = vrsqrt.pop %v162
    %v166 = vrsqrt.pop %v164
    %v167 = vmul.f32 %v153, %v165
    %v168 = vmul.f32 %v156, %v166
    %169 = vst [vmem:[#allocation7] sm:$0xff] %v167
    %170 = vst [vmem:[#allocation7 + $0x8] sm:$0xff] %v168
    // Predicated region
    $region22: #{tpu_custom_call.1} parent=1 // pred_check
      _
    $region23: #{tpu_custom_call.1} parent=1 // pred_check_branch
      %172 = sbr.rel (0) target = $region25
    $region24: #{tpu_custom_call.1} parent=1 // pred_region
      %s174 = ssub.s32 256, 256
      %175 = vsyncadd [#allocation4], %s174
      %s176 = sshll.u32 [#allocation7], 4
      %s177 = int_to_ptr.vmem [resolvable:$true] %s176
      %182 = dma.vmem_to_hbm [thread:$0]  %s177, 256, %s3, [#allocation4], 128, 128, 8
    $region25: #{tpu_custom_call.1} parent=1 // pred_fallthru
      _
    // Predicated region
    $region26: #{tpu_custom_call.1} parent=1 // pred_check
      _
    $region27: #{tpu_custom_call.1} parent=1 // pred_check_branch
      %184 = sbr.rel (0) target = $region29
    $region28: #{tpu_custom_call.1} parent=1 // pred_region
      %185 = dma.done [#allocation4], 256
    $region29: #{tpu_custom_call.1} parent=1 // pred_fallthru
      _
    %186 = vsyncpa [#allocation3], 1
    %187 = vsyncpa [#allocation6], 1
    %188 = vsyncpa [#allocation4], 1

</llo_original>
